<compile_context>
chip_gen: v7x
topology: tpu7x:2x2x1
jax: 0.10.0
libtpu: 0.0.40
codegen_flags: <defaults>
</compile_context>

<pallas_src>
import jax
import jax.numpy as jnp
from jax.experimental import pallas as pl
from jax.experimental.pallas import tpu as pltpu

N_FEATURES = 16        # n_features = X.shape[1] in the reference script
H1, H2 = 20, 10
N_LAYERS = 4
LANE = 128             # every layer's lane (last) dim is padded to 128


def _round_up(x, m):
    return ((x + m - 1) // m) * m


def _sigmoid(x):
    # exp runs on the EUP; exact reciprocal (approx=False) keeps numerics
    # identical to 1/(1+exp(-x)) within the 1e-5 allclose tolerance.
    return pl.reciprocal(1.0 + jnp.exp(-x), approx=False)


def sae_kernel(x_ref, w_ref, b_ref, o_ref):
    """Full 4-layer forward for one (TB, 128) batch tile.

    x_ref: (TB, 128)          zero-padded input tile
    w_ref: (4, 128, 128)      packed, zero-padded weights (in, out) per layer
    b_ref: (4, 128)           packed, zero-padded biases per layer
    o_ref: (TB, 128)          lane-dense output tile (caller slices to F)
    """
    h = x_ref[...]
    for layer in range(N_LAYERS):                       # static, unrolled
        z = jnp.dot(h, w_ref[layer], preferred_element_type=jnp.float32)
        z = z + b_ref[layer:layer + 1, :]
        h = _sigmoid(z)
    o_ref[...] = h.astype(o_ref.dtype)


def pack_params(params):
    """Pack the 4 (W, b) pairs into two zero-padded, lane-dense slabs."""
    w_slab = jnp.zeros((N_LAYERS, LANE, LANE), jnp.float32)
    b_slab = jnp.zeros((N_LAYERS, LANE), jnp.float32)
    for i, (w, b) in enumerate(params):
        fin, fout = w.shape
        w_slab = w_slab.at[i, :fin, :fout].set(w)
        b_slab = b_slab.at[i, :fout].set(b.reshape(-1))
    return w_slab, b_slab


def sae_forward(x, params, *, block_b=256):
    B, F = x.shape
    w_slab, b_slab = pack_params(params)

    # Batch tile: multiple of 8 sublanes; 256 keeps the v6e/v7x MXU full for
    # large batches, small batches collapse to a single tile (use 128 on v5e).
    tb = min(block_b, _round_up(B, 8))
    b_pad = _round_up(B, tb)

    # Lane-dense, zero-padded input slab.
    x_pad = jnp.zeros((b_pad, LANE), jnp.float32).at[:B, :F].set(x)

    flops = 2 * B * (F * H1 + H1 * H2 + H2 * H1 + H1 * F)
    transcendentals = B * (H1 + H2 + H1 + F)
    bytes_accessed = 4 * (2 * B * F + sum(w.size + b.size for (w, b) in params))

    out_pad = pl.pallas_call(
        sae_kernel,
        out_shape=jax.ShapeDtypeStruct((b_pad, LANE), jnp.float32),
        grid=(b_pad // tb,),
        in_specs=[
            # input: tiled along the batch axis
            pl.BlockSpec((tb, LANE), lambda i: (i, 0)),
            # weights / biases: constant block index -> VMEM-resident
            pl.BlockSpec((N_LAYERS, LANE, LANE), lambda i: (0, 0, 0)),
            pl.BlockSpec((N_LAYERS, LANE), lambda i: (0, 0)),
        ],
        out_specs=pl.BlockSpec((tb, LANE), lambda i: (i, 0)),
        compiler_params=pltpu.CompilerParams(
            dimension_semantics=("parallel",)),   # v7x: shard tiles over 2 TCs
        cost_estimate=pl.CostEstimate(
            flops=flops,
            transcendentals=transcendentals,
            bytes_accessed=bytes_accessed),
    )(x_pad, w_slab, b_slab)

    return out_pad[:B, :F]


def init_params(key, n_features):
    """Deterministic init mimicking torch.nn.Linear default:
    U(-1/sqrt(fan_in), 1/sqrt(fan_in)) for both weight and bias.
    Weights are stored transposed vs. torch, i.e. shape (in, out)."""
    dims = [(n_features, H1), (H1, H2), (H2, H1), (H1, n_features)]
    params = []
    for (fan_in, fan_out) in dims:
        key, kw, kb = jax.random.split(key, 3)
        bound = 1.0 / jnp.sqrt(jnp.float32(fan_in))
        w = jax.random.uniform(kw, (fan_in, fan_out), jnp.float32,
                               minval=-bound, maxval=bound)
        b = jax.random.uniform(kb, (1, fan_out), jnp.float32,
                               minval=-bound, maxval=bound)
        params.append((w, b))
    return params


def sae_reference(x, params):
    h = x
    for (w, b) in params:
        h = 1.0 / (1.0 + jnp.exp(-(h @ w + b)))
    return h


if __name__ == "__main__":
    key = jax.random.PRNGKey(0)
    key, kx = jax.random.split(key)

    batch = 8
    # MinMaxScaler output is in [0, 1]; emulate that range for the input.
    x = jax.random.uniform(kx, (batch, N_FEATURES), jnp.float32)
    params = init_params(key, N_FEATURES)

    out = jax.block_until_ready(sae_forward(x, params))
    ref = sae_reference(x, params)
    assert out.shape == (batch, N_FEATURES)
    assert jnp.allclose(out, ref, atol=1e-5, rtol=1e-5), "mismatch vs reference"

    # Exercise the multi-tile grid path (resident weights across 2 grid steps).
    key, kx2 = jax.random.split(key)
    x_big = jax.random.uniform(kx2, (300, N_FEATURES), jnp.float32)
    out_big = jax.block_until_ready(sae_forward(x_big, params))
    ref_big = sae_reference(x_big, params)
    assert out_big.shape == (300, N_FEATURES)
    assert jnp.allclose(out_big, ref_big, atol=1e-5, rtol=1e-5), "grid mismatch"

    print("KERNEL_OK")
</pallas_src>

<mosaic_0001>
module attributes {stable_mosaic.version = 11 : i64} {
  func.func @sae_kernel(%arg0: i32, %arg1: memref<8x128xf32, #tpu.memory_space<vmem>>, %arg2: memref<4x128x128xf32, #tpu.memory_space<vmem>>, %arg3: memref<4x128xf32, #tpu.memory_space<vmem>>, %arg4: memref<8x128xf32, #tpu.memory_space<vmem>>) attributes {dimension_semantics = [#tpu.dimension_semantics<parallel>], iteration_bounds = array<i64: 1>, scalar_prefetch = 0 : i64, scratch_operands = 0 : i64, tpu.core_type = #tpu.core_type<tc>, window_params = [{transform_indices = @transform_0, window_bounds = array<i64: 8, 128>}, {pipeline_mode = #tpu.pipeline_mode<synchronous>, transform_indices = @transform_1, window_bounds = array<i64: 4, 128, 128>}, {pipeline_mode = #tpu.pipeline_mode<synchronous>, transform_indices = @transform_2, window_bounds = array<i64: 4, 128>}, {transform_indices = @transform_3, window_bounds = array<i64: 8, 128>}]} {
    %c0 = arith.constant 0 : index
    %c0_0 = arith.constant 0 : index
    %0 = vector.load %arg1[%c0, %c0_0] : memref<8x128xf32, #tpu.memory_space<vmem>>, vector<8x128xf32>
    %c0_1 = arith.constant 0 : index
    %c0_2 = arith.constant 0 : index
    %c0_3 = arith.constant 0 : index
    %1 = vector.load %arg2[%c0_1, %c0_2, %c0_3] : memref<4x128x128xf32, #tpu.memory_space<vmem>>, vector<1x128x128xf32>
    %2 = vector.shape_cast %1 : vector<1x128x128xf32> to vector<128x128xf32>
    %cst = arith.constant dense<0.000000e+00> : vector<8x128xf32>
    %3 = tpu.matmul %0, %2, %cst {dimension_numbers = #tpu.dot_dimension_numbers<[1], [0], [0], [1], [0, 0, 1, 1], [], []>} : vector<8x128xf32>, vector<128x128xf32>, vector<8x128xf32> -> vector<8x128xf32>
    %c0_4 = arith.constant 0 : index
    %c0_5 = arith.constant 0 : index
    %4 = vector.load %arg3[%c0_4, %c0_5] : memref<4x128xf32, #tpu.memory_space<vmem>>, vector<1x128xf32>
    %5 = vector.broadcast %4 : vector<1x128xf32> to vector<8x128xf32>
    %6 = arith.addf %3, %5 : vector<8x128xf32>
    %cst_6 = arith.constant 0.000000e+00 : f32
    %7 = vector.broadcast %cst_6 : f32 to vector<8x128xf32>
    %8 = arith.subf %7, %6 : vector<8x128xf32>
    %9 = math.exp %8 : vector<8x128xf32>
    %cst_7 = arith.constant 1.000000e+00 : f32
    %10 = vector.broadcast %cst_7 : f32 to vector<8x128xf32>
    %11 = arith.addf %10, %9 : vector<8x128xf32>
    %12 = tpu.reciprocal %11 : vector<8x128xf32> -> vector<8x128xf32>
    %c1 = arith.constant 1 : index
    %c0_8 = arith.constant 0 : index
    %c0_9 = arith.constant 0 : index
    %13 = vector.load %arg2[%c1, %c0_8, %c0_9] : memref<4x128x128xf32, #tpu.memory_space<vmem>>, vector<1x128x128xf32>
    %14 = vector.shape_cast %13 : vector<1x128x128xf32> to vector<128x128xf32>
    %cst_10 = arith.constant dense<0.000000e+00> : vector<8x128xf32>
    %15 = tpu.matmul %12, %14, %cst_10 {dimension_numbers = #tpu.dot_dimension_numbers<[1], [0], [0], [1], [0, 0, 1, 1], [], []>} : vector<8x128xf32>, vector<128x128xf32>, vector<8x128xf32> -> vector<8x128xf32>
    %c1_11 = arith.constant 1 : index
    %c0_12 = arith.constant 0 : index
    %16 = vector.load %arg3[%c1_11, %c0_12] : memref<4x128xf32, #tpu.memory_space<vmem>>, vector<1x128xf32>
    %17 = vector.broadcast %16 : vector<1x128xf32> to vector<8x128xf32>
    %18 = arith.addf %15, %17 : vector<8x128xf32>
    %cst_13 = arith.constant 0.000000e+00 : f32
    %19 = vector.broadcast %cst_13 : f32 to vector<8x128xf32>
    %20 = arith.subf %19, %18 : vector<8x128xf32>
    %21 = math.exp %20 : vector<8x128xf32>
    %cst_14 = arith.constant 1.000000e+00 : f32
    %22 = vector.broadcast %cst_14 : f32 to vector<8x128xf32>
    %23 = arith.addf %22, %21 : vector<8x128xf32>
    %24 = tpu.reciprocal %23 : vector<8x128xf32> -> vector<8x128xf32>
    %c2 = arith.constant 2 : index
    %c0_15 = arith.constant 0 : index
    %c0_16 = arith.constant 0 : index
    %25 = vector.load %arg2[%c2, %c0_15, %c0_16] : memref<4x128x128xf32, #tpu.memory_space<vmem>>, vector<1x128x128xf32>
    %26 = vector.shape_cast %25 : vector<1x128x128xf32> to vector<128x128xf32>
    %cst_17 = arith.constant dense<0.000000e+00> : vector<8x128xf32>
    %27 = tpu.matmul %24, %26, %cst_17 {dimension_numbers = #tpu.dot_dimension_numbers<[1], [0], [0], [1], [0, 0, 1, 1], [], []>} : vector<8x128xf32>, vector<128x128xf32>, vector<8x128xf32> -> vector<8x128xf32>
    %c2_18 = arith.constant 2 : index
    %c0_19 = arith.constant 0 : index
    %28 = vector.load %arg3[%c2_18, %c0_19] : memref<4x128xf32, #tpu.memory_space<vmem>>, vector<1x128xf32>
    %29 = vector.broadcast %28 : vector<1x128xf32> to vector<8x128xf32>
    %30 = arith.addf %27, %29 : vector<8x128xf32>
    %cst_20 = arith.constant 0.000000e+00 : f32
    %31 = vector.broadcast %cst_20 : f32 to vector<8x128xf32>
    %32 = arith.subf %31, %30 : vector<8x128xf32>
    %33 = math.exp %32 : vector<8x128xf32>
    %cst_21 = arith.constant 1.000000e+00 : f32
    %34 = vector.broadcast %cst_21 : f32 to vector<8x128xf32>
    %35 = arith.addf %34, %33 : vector<8x128xf32>
    %36 = tpu.reciprocal %35 : vector<8x128xf32> -> vector<8x128xf32>
    %c3 = arith.constant 3 : index
    %c0_22 = arith.constant 0 : index
    %c0_23 = arith.constant 0 : index
    %37 = vector.load %arg2[%c3, %c0_22, %c0_23] : memref<4x128x128xf32, #tpu.memory_space<vmem>>, vector<1x128x128xf32>
    %38 = vector.shape_cast %37 : vector<1x128x128xf32> to vector<128x128xf32>
    %cst_24 = arith.constant dense<0.000000e+00> : vector<8x128xf32>
    %39 = tpu.matmul %36, %38, %cst_24 {dimension_numbers = #tpu.dot_dimension_numbers<[1], [0], [0], [1], [0, 0, 1, 1], [], []>} : vector<8x128xf32>, vector<128x128xf32>, vector<8x128xf32> -> vector<8x128xf32>
    %c3_25 = arith.constant 3 : index
    %c0_26 = arith.constant 0 : index
    %40 = vector.load %arg3[%c3_25, %c0_26] : memref<4x128xf32, #tpu.memory_space<vmem>>, vector<1x128xf32>
    %41 = vector.broadcast %40 : vector<1x128xf32> to vector<8x128xf32>
    %42 = arith.addf %39, %41 : vector<8x128xf32>
    %cst_27 = arith.constant 0.000000e+00 : f32
    %43 = vector.broadcast %cst_27 : f32 to vector<8x128xf32>
    %44 = arith.subf %43, %42 : vector<8x128xf32>
    %45 = math.exp %44 : vector<8x128xf32>
    %cst_28 = arith.constant 1.000000e+00 : f32
    %46 = vector.broadcast %cst_28 : f32 to vector<8x128xf32>
    %47 = arith.addf %46, %45 : vector<8x128xf32>
    %48 = tpu.reciprocal %47 : vector<8x128xf32> -> vector<8x128xf32>
    %c0_29 = arith.constant 0 : index
    %c0_30 = arith.constant 0 : index
    %49 = vector.load %arg4[%c0_29, %c0_30] : memref<8x128xf32, #tpu.memory_space<vmem>>, vector<8x128xf32>
    tpu.vector_store %arg4[%c0_29, %c0_30], %48 {strides = array<i32>} : memref<8x128xf32, #tpu.memory_space<vmem>>, vector<8x128xf32>,
    return
  }
  func.func @transform_0(%arg0: i32) -> (i32, i32) {
    %c0_i32 = arith.constant 0 : i32
    %c0_i32_0 = arith.constant 0 : i32
    return %arg0, %c0_i32 : i32, i32
  }
  func.func @transform_1(%arg0: i32) -> (i32, i32, i32) {
    %c0_i32 = arith.constant 0 : i32
    %c0_i32_0 = arith.constant 0 : i32
    %c0_i32_1 = arith.constant 0 : i32
    %c0_i32_2 = arith.constant 0 : i32
    return %c0_i32, %c0_i32_0, %c0_i32_1 : i32, i32, i32
  }
  func.func @transform_2(%arg0: i32) -> (i32, i32) {
    %c0_i32 = arith.constant 0 : i32
    %c0_i32_0 = arith.constant 0 : i32
    %c0_i32_1 = arith.constant 0 : i32
    return %c0_i32, %c0_i32_0 : i32, i32
  }
  func.func @transform_3(%arg0: i32) -> (i32, i32) {
    %c0_i32 = arith.constant 0 : i32
    %c0_i32_0 = arith.constant 0 : i32
    return %arg0, %c0_i32 : i32, i32
  }
}

</mosaic_0001>

<llo_original>
// kernel: tpu_custom_call.1
$region0: #{tpu_custom_call.1}
  #allocation0 [shape = 'u32[]', space=smem, size = 0x4, offset = 0x4, fixed_abs, tag = 'smem constant byte address 0x4 - core index']
  #allocation1 [shape = 'u32[144,128]{1,0:T(1,128)}', space=vmem, size = 0x12000, scoped, tag = 'internal scratch']
  %s0 = inlined_call_operand.hbm [shape: f32[8,128], index: 0, kind: input, shape index: {}]
  %s1 = inlined_call_operand.hbm [shape: f32[4,128,128], index: 1, kind: input, shape index: {}]
  %s2 = inlined_call_operand.vmem [shape: f32[4,128], index: 2, kind: input, shape index: {}]
  %s3 = inlined_call_operand.hbm [shape: f32[8,128], index: 3, kind: output, shape index: {}]
  %s4 = sld [smem:[#allocation0]]
  $region30: #{tpu_custom_call.1} parent=0
    _
  %s6 = ssub.s32 1, %s4
  %s7 = scalar_select 0, %s6, %s4
  $region1: #{tpu_custom_call.1} parent=0
    #allocation2 [shape = 'u8[4096]{0}', space=vmem, size = 0x1000, scoped, tag = 'input window, operand 0, single buffered']
    #allocation3 [shape = 's32[1]{0}', space=sflag, size = 0x4, scoped, tag = 'scoped memory for tpu_custom_call.1']
    #allocation4 [shape = 's32[1]{0}', space=sflag, size = 0x4, scoped, tag = 'scoped memory for tpu_custom_call.1']
    #allocation5 [shape = 'u8[262144]{0}', space=vmem, size = 0x40000, scoped, tag = 'input window, operand 1, single buffered']
    #allocation6 [shape = 's32[1]{0}', space=sflag, size = 0x4, scoped, tag = 'scoped memory for tpu_custom_call.1']
    #allocation7 [shape = 'u8[4096]{0}', space=vmem, size = 0x1000, scoped, tag = 'output window, operand 0, single buffered']
    %8 = vsyncpa [#allocation3], 0
    %9 = vsyncpa [#allocation6], 0
    %10 = vsyncpa [#allocation4], 0
    // Predicated region
    $region2: #{tpu_custom_call.1} parent=1 // pred_check
      _
    $region3: #{tpu_custom_call.1} parent=1 // pred_check_branch
      %12 = sbr.rel (0) target = $region5
    $region4: #{tpu_custom_call.1} parent=1 // pred_region
      %s14 = ssub.s32 128, 128
      %15 = vsyncadd [#allocation3], %s14
      %s17 = sshll.u32 [#allocation2], 4
      %s18 = int_to_ptr.vmem [resolvable:$true] %s17
      %20 = dma.hbm_to_vmem [thread:$0]  %s0, 128, %s18, [#allocation3]
    $region5: #{tpu_custom_call.1} parent=1 // pred_fallthru
      _
    // Predicated region
    $region6: #{tpu_custom_call.1} parent=1 // pred_check
      _
    $region7: #{tpu_custom_call.1} parent=1 // pred_check_branch
      %22 = sbr.rel (0) target = $region9
    $region8: #{tpu_custom_call.1} parent=1 // pred_region
      %s24 = ssub.s32 8192, 8192
      %25 = vsyncadd [#allocation6], %s24
      %s26 = sshll.u32 [#allocation5], 4
      %s27 = int_to_ptr.vmem [resolvable:$true] %s26
      %32 = dma.hbm_to_vmem [thread:$0]  %s1, 8192, %s27, [#allocation6], 128, 128, 8
    $region9: #{tpu_custom_call.1} parent=1 // pred_fallthru
      _
    // Predicated region
    $region10: #{tpu_custom_call.1} parent=1 // pred_check
      _
    $region11: #{tpu_custom_call.1} parent=1 // pred_check_branch
      %34 = sbr.rel (0) target = $region13
    $region12: #{tpu_custom_call.1} parent=1 // pred_region
      _
    $region13: #{tpu_custom_call.1} parent=1 // pred_fallthru
      _
    // Predicated region
    $region14: #{tpu_custom_call.1} parent=1 // pred_check
      _
    $region15: #{tpu_custom_call.1} parent=1 // pred_check_branch
      %36 = sbr.rel (0) target = $region17
    $region16: #{tpu_custom_call.1} parent=1 // pred_region
      %37 = dma.done [#allocation3], 128
    $region17: #{tpu_custom_call.1} parent=1 // pred_fallthru
      _
    // Predicated region
    $region18: #{tpu_custom_call.1} parent=1 // pred_check
      _
    $region19: #{tpu_custom_call.1} parent=1 // pred_check_branch
      %39 = sbr.rel (0) target = $region21
    $region20: #{tpu_custom_call.1} parent=1 // pred_region
      %40 = dma.done [#allocation6], 8192
    $region21: #{tpu_custom_call.1} parent=1 // pred_fallthru
      _
    %v41 = vld [vmem:[#allocation2] sm:$0xff]
    %v42 = vld [vmem:[#allocation5] sm:$0xff]
    %v43 = vld [vmem:[#allocation5 + $0x8] sm:$0xff]
    %v44 = vld [vmem:[#allocation5 + $0x10] sm:$0xff]
    %v45 = vld [vmem:[#allocation5 + $0x18] sm:$0xff]
    %v46 = vld [vmem:[#allocation5 + $0x20] sm:$0xff]
    %v47 = vld [vmem:[#allocation5 + $0x28] sm:$0xff]
    %v48 = vld [vmem:[#allocation5 + $0x30] sm:$0xff]
    %v49 = vld [vmem:[#allocation5 + $0x38] sm:$0xff]
    %v50 = vld [vmem:[#allocation5 + $0x40] sm:$0xff]
    %v51 = vld [vmem:[#allocation5 + $0x48] sm:$0xff]
    %v52 = vld [vmem:[#allocation5 + $0x50] sm:$0xff]
    %v53 = vld [vmem:[#allocation5 + $0x58] sm:$0xff]
    %v54 = vld [vmem:[#allocation5 + $0x60] sm:$0xff]
    %v55 = vld [vmem:[#allocation5 + $0x68] sm:$0xff]
    %v56 = vld [vmem:[#allocation5 + $0x70] sm:$0xff]
    %v57 = vld [vmem:[#allocation5 + $0x78] sm:$0xff]
    %v58 = vld [vmem:[%s2] sm:$0x1]
    %v59 = vlaneseq
    %v60 = vshrl.u32 %v59, 7
    %v61 = vsub.s32 0, %v60
    %v62 = vrot.slane %v58, %v61
    %63 = vmatprep.subr.mxu0 0.0
    %64 = vmatpush1.msra.mxu0 %v42
    %65 = vmatprep.subr.mxu0 0.0
    %66 = vmatpush1.msra.mxu0 %v43
    %67 = vmatprep.subr.mxu0 0.0
    %68 = vmatpush1.msra.mxu0 %v44
    %69 = vmatprep.subr.mxu0 0.0
    %70 = vmatpush1.msra.mxu0 %v45
    %71 = vmatprep.subr.mxu0 0.0
    %72 = vmatpush1.msra.mxu0 %v46
    %73 = vmatprep.subr.mxu0 0.0
    %74 = vmatpush1.msra.mxu0 %v47
    %75 = vmatprep.subr.mxu0 0.0
    %76 = vmatpush1.msra.mxu0 %v48
    %77 = vmatprep.subr.mxu0 0.0
    %78 = vmatpush1.msra.mxu0 %v49
    %79 = vmatprep.subr.mxu0 0.0
    %80 = vmatpush1.msra.mxu0 %v50
    %81 = vmatprep.subr.mxu0 0.0
    %82 = vmatpush1.msra.mxu0 %v51
    %83 = vmatprep.subr.mxu0 0.0
    %84 = vmatpush1.msra.mxu0 %v52
    %85 = vmatprep.subr.mxu0 0.0
    %86 = vmatpush1.msra.mxu0 %v53
    %87 = vmatprep.subr.mxu0 0.0
    %88 = vmatpush1.msra.mxu0 %v54
    %89 = vmatprep.subr.mxu0 0.0
    %90 = vmatpush1.msra.mxu0 %v55
    %91 = vmatprep.subr.mxu0 0.0
    %92 = vmatpush1.msra.mxu0 %v56
    %93 = vmatprep.subr.mxu0 0.0
    %94 = vmatpush1.msra.mxu0 %v57
    %95 = vmatprep.subr.mxu0 0.0
    %96 = vmatpush1.msra.mxu0 0.0
    %97 = vmatprep.subr.mxu0 0.0
    %98 = vmatpush1.msra.mxu0 0.0
    %99 = vmatprep.subr.mxu0 0.0
    %100 = vmatpush1.msra.mxu0 0.0
    %101 = vmatprep.subr.mxu0 0.0
    %102 = vmatpush1.msra.mxu0 0.0
    %103 = vmatprep.subr.mxu0 0.0
    %104 = vmatpush1.msra.mxu0 0.0
    %105 = vmatprep.subr.mxu0 0.0
    %106 = vmatpush1.msra.mxu0 0.0
    %107 = vmatprep.subr.mxu0 0.0
    %108 = vmatpush1.msra.mxu0 0.0
    %109 = vmatprep.subr.mxu0 0.0
    %110 = vmatpush1.msra.mxu0 0.0
    %111 = vmatprep.subr.mxu0 0.0
    %112 = vmatpush1.msra.mxu0 0.0
    %113 = vmatprep.subr.mxu0 0.0
    %114 = vmatpush1.msra.mxu0 0.0
    %115 = vmatprep.subr.mxu0 0.0
    %116 = vmatpush1.msra.mxu0 0.0
    %117 = vmatprep.subr.mxu0 0.0
    %118 = vmatpush1.msra.mxu0 0.0
    %119 = vmatprep.subr.mxu0 0.0
    %120 = vmatpush1.msra.mxu0 0.0
    %121 = vmatprep.subr.mxu0 0.0
    %122 = vmatpush1.msra.mxu0 0.0
    %123 = vmatprep.subr.mxu0 0.0
    %124 = vmatpush1.msra.mxu0 0.0
    %125 = vmatprep.subr.mxu0 0.0
    %126 = vmatpush1.msra.mxu0 0.0
    %127 = vmatprep.mubr.f32.mxu0 0.0
    %128 = vmatmul.mubr.f32.gmra.mrb[0].mxu0 %v41
    %v129 = vpop.f32.mrb[0].mxu0
    %v130 = vadd.f32 %v62, %v129
    %v131 = vpop.f32.mrb[0].mxu0
    %132 = vdwg.mxu0
    %v133 = vsub.f32 0.0, %v130
    %v134 = vmul.f32 %v133, 1.442695
    %v135 = vpow.pop %v134
    %v136 = vadd.f32 %v135, 1.0
    %v137 = vrcp.pop %v136
    %s138 = scalar_lea.vmem [#allocation5], 128
    %v139 = vld [vmem:[%s138] sm:$0xff]
    %v140 = vld [vmem:[%s138 + $0x8] sm:$0xff]
    %v141 = vld [vmem:[%s138 + $0x10] sm:$0xff]
    %v142 = vld [vmem:[%s138 + $0x18] sm:$0xff]
    %v143 = vld [vmem:[%s138 + $0x20] sm:$0xff]
    %v144 = vld [vmem:[%s138 + $0x28] sm:$0xff]
    %v145 = vld [vmem:[%s138 + $0x30] sm:$0xff]
    %v146 = vld [vmem:[%s138 + $0x38] sm:$0xff]
    %v147 = vld [vmem:[%s138 + $0x40] sm:$0xff]
    %v148 = vld [vmem:[%s138 + $0x48] sm:$0xff]
    %v149 = vld [vmem:[%s138 + $0x50] sm:$0xff]
    %v150 = vld [vmem:[%s138 + $0x58] sm:$0xff]
    %v151 = vld [vmem:[%s138 + $0x60] sm:$0xff]
    %v152 = vld [vmem:[%s138 + $0x68] sm:$0xff]
    %v153 = vld [vmem:[%s138 + $0x70] sm:$0xff]
    %v154 = vld [vmem:[%s138 + $0x78] sm:$0xff]
    %v155 = vld [vmem:[%s2 + $0x1] sm:$0x1]
    %v156 = vlaneseq
    %v157 = vshrl.u32 %v156, 7
    %v158 = vsub.s32 0, %v157
    %v159 = vrot.slane %v155, %v158
    %160 = vmatprep.subr.mxu0 0.0
    %161 = vmatpush1.msra.mxu0 %v139
    %162 = vmatprep.subr.mxu0 0.0
    %163 = vmatpush1.msra.mxu0 %v140
    %164 = vmatprep.subr.mxu0 0.0
    %165 = vmatpush1.msra.mxu0 %v141
    %166 = vmatprep.subr.mxu0 0.0
    %167 = vmatpush1.msra.mxu0 %v142
    %168 = vmatprep.subr.mxu0 0.0
    %169 = vmatpush1.msra.mxu0 %v143
    %170 = vmatprep.subr.mxu0 0.0
    %171 = vmatpush1.msra.mxu0 %v144
    %172 = vmatprep.subr.mxu0 0.0
    %173 = vmatpush1.msra.mxu0 %v145
    %174 = vmatprep.subr.mxu0 0.0
    %175 = vmatpush1.msra.mxu0 %v146
    %176 = vmatprep.subr.mxu0 0.0
    %177 = vmatpush1.msra.mxu0 %v147
    %178 = vmatprep.subr.mxu0 0.0
    %179 = vmatpush1.msra.mxu0 %v148
    %180 = vmatprep.subr.mxu0 0.0
    %181 = vmatpush1.msra.mxu0 %v149
    %182 = vmatprep.subr.mxu0 0.0
    %183 = vmatpush1.msra.mxu0 %v150
    %184 = vmatprep.subr.mxu0 0.0
    %185 = vmatpush1.msra.mxu0 %v151
    %186 = vmatprep.subr.mxu0 0.0
    %187 = vmatpush1.msra.mxu0 %v152
    %188 = vmatprep.subr.mxu0 0.0
    %189 = vmatpush1.msra.mxu0 %v153
    %190 = vmatprep.subr.mxu0 0.0
    %191 = vmatpush1.msra.mxu0 %v154
    %192 = vmatprep.subr.mxu0 0.0
    %193 = vmatpush1.msra.mxu0 0.0
    %194 = vmatprep.subr.mxu0 0.0
    %195 = vmatpush1.msra.mxu0 0.0
    %196 = vmatprep.subr.mxu0 0.0
    %197 = vmatpush1.msra.mxu0 0.0
    %198 = vmatprep.subr.mxu0 0.0
    %199 = vmatpush1.msra.mxu0 0.0
    %200 = vmatprep.subr.mxu0 0.0
    %201 = vmatpush1.msra.mxu0 0.0
    %202 = vmatprep.subr.mxu0 0.0
    %203 = vmatpush1.msra.mxu0 0.0
    %204 = vmatprep.subr.mxu0 0.0
    %205 = vmatpush1.msra.mxu0 0.0
    %206 = vmatprep.subr.mxu0 0.0
    %207 = vmatpush1.msra.mxu0 0.0
    %208 = vmatprep.subr.mxu0 0.0
    %209 = vmatpush1.msra.mxu0 0.0
    %210 = vmatprep.subr.mxu0 0.0
    %211 = vmatpush1.msra.mxu0 0.0
    %212 = vmatprep.subr.mxu0 0.0
    %213 = vmatpush1.msra.mxu0 0.0
    %214 = vmatprep.subr.mxu0 0.0
    %215 = vmatpush1.msra.mxu0 0.0
    %216 = vmatprep.subr.mxu0 0.0
    %217 = vmatpush1.msra.mxu0 0.0
    %218 = vmatprep.subr.mxu0 0.0
    %219 = vmatpush1.msra.mxu0 0.0
    %220 = vmatprep.subr.mxu0 0.0
    %221 = vmatpush1.msra.mxu0 0.0
    %222 = vmatprep.subr.mxu0 0.0
    %223 = vmatpush1.msra.mxu0 0.0
    %224 = vmatprep.mubr.f32.mxu0 0.0
    %225 = vmatmul.mubr.f32.gmra.mrb[0].mxu0 %v137
    %v226 = vpop.f32.mrb[0].mxu0
    %v227 = vadd.f32 %v159, %v226
    %v228 = vpop.f32.mrb[0].mxu0
    %229 = vdwg.mxu0
    %v230 = vsub.f32 0.0, %v227
    %v231 = vmul.f32 %v230, 1.442695
    %v232 = vpow.pop %v231
    %v233 = vadd.f32 %v232, 1.0
    %v234 = vrcp.pop %v233
    %s235 = scalar_lea.vmem [#allocation5], 256
    %v236 = vld [vmem:[%s235] sm:$0xff]
    %v237 = vld [vmem:[%s235 + $0x8] sm:$0xff]
    %v238 = vld [vmem:[%s235 + $0x10] sm:$0xff]
    %v239 = vld [vmem:[%s235 + $0x18] sm:$0xff]
    %v240 = vld [vmem:[%s235 + $0x20] sm:$0xff]
    %v241 = vld [vmem:[%s235 + $0x28] sm:$0xff]
    %v242 = vld [vmem:[%s235 + $0x30] sm:$0xff]
    %v243 = vld [vmem:[%s235 + $0x38] sm:$0xff]
    %v244 = vld [vmem:[%s235 + $0x40] sm:$0xff]
    %v245 = vld [vmem:[%s235 + $0x48] sm:$0xff]
    %v246 = vld [vmem:[%s235 + $0x50] sm:$0xff]
    %v247 = vld [vmem:[%s235 + $0x58] sm:$0xff]
    %v248 = vld [vmem:[%s235 + $0x60] sm:$0xff]
    %v249 = vld [vmem:[%s235 + $0x68] sm:$0xff]
    %v250 = vld [vmem:[%s235 + $0x70] sm:$0xff]
    %v251 = vld [vmem:[%s235 + $0x78] sm:$0xff]
    %v252 = vld [vmem:[%s2 + $0x2] sm:$0x1]
    %v253 = vlaneseq
    %v254 = vshrl.u32 %v253, 7
    %v255 = vsub.s32 0, %v254
    %v256 = vrot.slane %v252, %v255
    %257 = vmatprep.subr.mxu0 0.0
    %258 = vmatpush1.msra.mxu0 %v236
    %259 = vmatprep.subr.mxu0 0.0
    %260 = vmatpush1.msra.mxu0 %v237
    %261 = vmatprep.subr.mxu0 0.0
    %262 = vmatpush1.msra.mxu0 %v238
    %263 = vmatprep.subr.mxu0 0.0
    %264 = vmatpush1.msra.mxu0 %v239
    %265 = vmatprep.subr.mxu0 0.0
    %266 = vmatpush1.msra.mxu0 %v240
    %267 = vmatprep.subr.mxu0 0.0
    %268 = vmatpush1.msra.mxu0 %v241
    %269 = vmatprep.subr.mxu0 0.0
    %270 = vmatpush1.msra.mxu0 %v242
    %271 = vmatprep.subr.mxu0 0.0
    %272 = vmatpush1.msra.mxu0 %v243
    %273 = vmatprep.subr.mxu0 0.0
    %274 = vmatpush1.msra.mxu0 %v244
    %275 = vmatprep.subr.mxu0 0.0
    %276 = vmatpush1.msra.mxu0 %v245
    %277 = vmatprep.subr.mxu0 0.0
    %278 = vmatpush1.msra.mxu0 %v246
    %279 = vmatprep.subr.mxu0 0.0
    %280 = vmatpush1.msra.mxu0 %v247
    %281 = vmatprep.subr.mxu0 0.0
    %282 = vmatpush1.msra.mxu0 %v248
    %283 = vmatprep.subr.mxu0 0.0
    %284 = vmatpush1.msra.mxu0 %v249
    %285 = vmatprep.subr.mxu0 0.0
    %286 = vmatpush1.msra.mxu0 %v250
    %287 = vmatprep.subr.mxu0 0.0
    %288 = vmatpush1.msra.mxu0 %v251
    %289 = vmatprep.subr.mxu0 0.0
    %290 = vmatpush1.msra.mxu0 0.0
    %291 = vmatprep.subr.mxu0 0.0
    %292 = vmatpush1.msra.mxu0 0.0
    %293 = vmatprep.subr.mxu0 0.0
    %294 = vmatpush1.msra.mxu0 0.0
    %295 = vmatprep.subr.mxu0 0.0
    %296 = vmatpush1.msra.mxu0 0.0
    %297 = vmatprep.subr.mxu0 0.0
    %298 = vmatpush1.msra.mxu0 0.0
    %299 = vmatprep.subr.mxu0 0.0
    %300 = vmatpush1.msra.mxu0 0.0
    %301 = vmatprep.subr.mxu0 0.0
    %302 = vmatpush1.msra.mxu0 0.0
    %303 = vmatprep.subr.mxu0 0.0
    %304 = vmatpush1.msra.mxu0 0.0
    %305 = vmatprep.subr.mxu0 0.0
    %306 = vmatpush1.msra.mxu0 0.0
    %307 = vmatprep.subr.mxu0 0.0
    %308 = vmatpush1.msra.mxu0 0.0
    %309 = vmatprep.subr.mxu0 0.0
    %310 = vmatpush1.msra.mxu0 0.0
    %311 = vmatprep.subr.mxu0 0.0
    %312 = vmatpush1.msra.mxu0 0.0
    %313 = vmatprep.subr.mxu0 0.0
    %314 = vmatpush1.msra.mxu0 0.0
    %315 = vmatprep.subr.mxu0 0.0
    %316 = vmatpush1.msra.mxu0 0.0
    %317 = vmatprep.subr.mxu0 0.0
    %318 = vmatpush1.msra.mxu0 0.0
    %319 = vmatprep.subr.mxu0 0.0
    %320 = vmatpush1.msra.mxu0 0.0
    %321 = vmatprep.mubr.f32.mxu0 0.0
    %322 = vmatmul.mubr.f32.gmra.mrb[0].mxu0 %v234
    %v323 = vpop.f32.mrb[0].mxu0
    %v324 = vadd.f32 %v256, %v323
    %v325 = vpop.f32.mrb[0].mxu0
    %326 = vdwg.mxu0
    %v327 = vsub.f32 0.0, %v324
    %v328 = vmul.f32 %v327, 1.442695
    %v329 = vpow.pop %v328
    %v330 = vadd.f32 %v329, 1.0
    %v331 = vrcp.pop %v330
    %s332 = scalar_lea.vmem [#allocation5], 384
    %v333 = vld [vmem:[%s332] sm:$0xff]
    %v334 = vld [vmem:[%s332 + $0x8] sm:$0xff]
    %v335 = vld [vmem:[%s332 + $0x10] sm:$0xff]
    %v336 = vld [vmem:[%s332 + $0x18] sm:$0xff]
    %v337 = vld [vmem:[%s332 + $0x20] sm:$0xff]
    %v338 = vld [vmem:[%s332 + $0x28] sm:$0xff]
    %v339 = vld [vmem:[%s332 + $0x30] sm:$0xff]
    %v340 = vld [vmem:[%s332 + $0x38] sm:$0xff]
    %v341 = vld [vmem:[%s332 + $0x40] sm:$0xff]
    %v342 = vld [vmem:[%s332 + $0x48] sm:$0xff]
    %v343 = vld [vmem:[%s332 + $0x50] sm:$0xff]
    %v344 = vld [vmem:[%s332 + $0x58] sm:$0xff]
    %v345 = vld [vmem:[%s332 + $0x60] sm:$0xff]
    %v346 = vld [vmem:[%s332 + $0x68] sm:$0xff]
    %v347 = vld [vmem:[%s332 + $0x70] sm:$0xff]
    %v348 = vld [vmem:[%s332 + $0x78] sm:$0xff]
    %v349 = vld [vmem:[%s2 + $0x3] sm:$0x1]
    %v350 = vlaneseq
    %v351 = vshrl.u32 %v350, 7
    %v352 = vsub.s32 0, %v351
    %v353 = vrot.slane %v349, %v352
    %354 = vmatprep.subr.mxu0 0.0
    %355 = vmatpush1.msra.mxu0 %v333
    %356 = vmatprep.subr.mxu0 0.0
    %357 = vmatpush1.msra.mxu0 %v334
    %358 = vmatprep.subr.mxu0 0.0
    %359 = vmatpush1.msra.mxu0 %v335
    %360 = vmatprep.subr.mxu0 0.0
    %361 = vmatpush1.msra.mxu0 %v336
    %362 = vmatprep.subr.mxu0 0.0
    %363 = vmatpush1.msra.mxu0 %v337
    %364 = vmatprep.subr.mxu0 0.0
    %365 = vmatpush1.msra.mxu0 %v338
    %366 = vmatprep.subr.mxu0 0.0
    %367 = vmatpush1.msra.mxu0 %v339
    %368 = vmatprep.subr.mxu0 0.0
    %369 = vmatpush1.msra.mxu0 %v340
    %370 = vmatprep.subr.mxu0 0.0
    %371 = vmatpush1.msra.mxu0 %v341
    %372 = vmatprep.subr.mxu0 0.0
    %373 = vmatpush1.msra.mxu0 %v342
    %374 = vmatprep.subr.mxu0 0.0
    %375 = vmatpush1.msra.mxu0 %v343
    %376 = vmatprep.subr.mxu0 0.0
    %377 = vmatpush1.msra.mxu0 %v344
    %378 = vmatprep.subr.mxu0 0.0
    %379 = vmatpush1.msra.mxu0 %v345
    %380 = vmatprep.subr.mxu0 0.0
    %381 = vmatpush1.msra.mxu0 %v346
    %382 = vmatprep.subr.mxu0 0.0
    %383 = vmatpush1.msra.mxu0 %v347
    %384 = vmatprep.subr.mxu0 0.0
    %385 = vmatpush1.msra.mxu0 %v348
    %386 = vmatprep.subr.mxu0 0.0
    %387 = vmatpush1.msra.mxu0 0.0
    %388 = vmatprep.subr.mxu0 0.0
    %389 = vmatpush1.msra.mxu0 0.0
    %390 = vmatprep.subr.mxu0 0.0
    %391 = vmatpush1.msra.mxu0 0.0
    %392 = vmatprep.subr.mxu0 0.0
    %393 = vmatpush1.msra.mxu0 0.0
    %394 = vmatprep.subr.mxu0 0.0
    %395 = vmatpush1.msra.mxu0 0.0
    %396 = vmatprep.subr.mxu0 0.0
    %397 = vmatpush1.msra.mxu0 0.0
    %398 = vmatprep.subr.mxu0 0.0
    %399 = vmatpush1.msra.mxu0 0.0
    %400 = vmatprep.subr.mxu0 0.0
    %401 = vmatpush1.msra.mxu0 0.0
    %402 = vmatprep.subr.mxu0 0.0
    %403 = vmatpush1.msra.mxu0 0.0
    %404 = vmatprep.subr.mxu0 0.0
    %405 = vmatpush1.msra.mxu0 0.0
    %406 = vmatprep.subr.mxu0 0.0
    %407 = vmatpush1.msra.mxu0 0.0
    %408 = vmatprep.subr.mxu0 0.0
    %409 = vmatpush1.msra.mxu0 0.0
    %410 = vmatprep.subr.mxu0 0.0
    %411 = vmatpush1.msra.mxu0 0.0
    %412 = vmatprep.subr.mxu0 0.0
    %413 = vmatpush1.msra.mxu0 0.0
    %414 = vmatprep.subr.mxu0 0.0
    %415 = vmatpush1.msra.mxu0 0.0
    %416 = vmatprep.subr.mxu0 0.0
    %417 = vmatpush1.msra.mxu0 0.0
    %418 = vmatprep.mubr.f32.mxu0 0.0
    %419 = vmatmul.mubr.f32.gmra.mrb[0].mxu0 %v331
    %v420 = vpop.f32.mrb[0].mxu0
    %v421 = vadd.f32 %v353, %v420
    %v422 = vpop.f32.mrb[0].mxu0
    %423 = vdwg.mxu0
    %v424 = vsub.f32 0.0, %v421
    %v425 = vmul.f32 %v424, 1.442695
    %v426 = vpow.pop %v425
    %v427 = vadd.f32 %v426, 1.0
    %v428 = vrcp.pop %v427
    %429 = vst [vmem:[#allocation7] sm:$0xff] %v428
    // Predicated region
    $region22: #{tpu_custom_call.1} parent=1 // pred_check
      _
    $region23: #{tpu_custom_call.1} parent=1 // pred_check_branch
      %431 = sbr.rel (0) target = $region25
    $region24: #{tpu_custom_call.1} parent=1 // pred_region
      %s433 = ssub.s32 128, 128
      %434 = vsyncadd [#allocation4], %s433
      %s436 = sshll.u32 [#allocation7], 4
      %s437 = int_to_ptr.vmem [resolvable:$true] %s436
      %439 = dma.vmem_to_hbm [thread:$0]  %s437, 128, %s3, [#allocation4]
    $region25: #{tpu_custom_call.1} parent=1 // pred_fallthru
      _
    // Predicated region
    $region26: #{tpu_custom_call.1} parent=1 // pred_check
      _
    $region27: #{tpu_custom_call.1} parent=1 // pred_check_branch
      %441 = sbr.rel (0) target = $region29
    $region28: #{tpu_custom_call.1} parent=1 // pred_region
      %442 = dma.done [#allocation4], 128
    $region29: #{tpu_custom_call.1} parent=1 // pred_fallthru
      _
    %443 = vsyncpa [#allocation3], 1
    %444 = vsyncpa [#allocation6], 1
    %445 = vsyncpa [#allocation4], 1

</llo_original>
